<compile_context>
chip_gen: v7x
topology: tpu7x:2x2x1
jax: 0.10.0
libtpu: 0.0.40
codegen_flags: <defaults>
</compile_context>

<pallas_src>
import jax
import jax.numpy as jnp
from jax import lax
from jax.experimental import pallas as pl
from jax.experimental.pallas import tpu as pltpu

# SELU constants (match torch.nn.SELU)
_SELU_SCALE = 1.0507009873554804934193349852946
_SELU_ALPHA = 1.6732632423543772848170429916717


def _expm1(y):
    """expm1 built from exp/mul/add/where only (no expm1 lowering dependency).

    For |y| < 1e-4 use the 2nd-order Taylor expansion y + y^2/2 (error ~y^3/6),
    which avoids the catastrophic cancellation of exp(y) - 1 near 0 and matches
    torch's expm1-based SELU to f32 rounding.
    """
    small = jnp.abs(y) < 1e-4
    return jnp.where(small, y + 0.5 * y * y, jnp.exp(y) - 1.0)


def _mlp_kernel(x_ref, w1_ref, w2_ref, o_ref):
    """Fused transposed MLP tile: o^T = W2 @ SELU(W1 @ x^T).

    Shapes (per grid step):
      x_ref : (TB, IN)   compute dtype (bf16 or f32)
      w1_ref: (H,  IN)   native nn.Linear layout, VMEM-resident
      w2_ref: (OUT, H)   native nn.Linear layout, VMEM-resident
      o_ref : (OUT, TB)  f32, lane-dense (batch on the lane axis)
    """
    x = x_ref[...]
    w1 = w1_ref[...]
    w2 = w2_ref[...]

    # layer1 (MXU): y^T = W1 @ x^T  -> (H, TB).  Contraction on the last dim of
    # both operands ("trans_b" style), f32 accumulation.
    y_t = lax.dot_general(
        w1, x,
        dimension_numbers=(((1,), (1,)), ((), ())),
        preferred_element_type=jnp.float32,
    )

    # SELU in f32 (VPU select + EUP exp); lane-dense vregs in this layout.
    neg = _SELU_ALPha if False else _SELU_ALPHA * _expm1(y_t)
    y_hat = _SELU_SCALE * jnp.where(y_t > 0.0, y_t, neg)

    # layer2 (MXU): z^T = W2 @ SELU(y)^T -> (OUT, TB), f32 accumulation.
    z_t = jnp.dot(w2, y_hat.astype(w2.dtype), preferred_element_type=jnp.float32)
    o_ref[...] = z_t.astype(o_ref.dtype)


def one_layer_nn_forward(x, w1, w2, *, compute_dtype=jnp.bfloat16, block_b=512):
    """x: (B, input_size); w1: (hidden, input_size); w2: (output, hidden).

    Returns scores of shape (B, output_size) in f32, matching the PyTorch module.

    compute_dtype: MXU operand dtype (bf16 recommended on v6e/v7x; f32 for an
      exact-precision path).  SELU and accumulation are always f32.
    block_b: batch tile size (rows per grid step).  >=512 amortizes per-step
      overhead for large batches; small batches use a single block.

    NOTE: if the production call pattern is many tiny (B~8) invocations per tree
    node, batch them at the caller into one large-B call -- no in-kernel change
    can recover launch + DMA fixed overhead at toy shapes.
    """
    B, IN = x.shape
    H, IN1 = w1.shape
    OUT, H1 = w2.shape
    assert IN1 == IN and H1 == H

    # Batch tile: single block for small B; otherwise a multiple of 128 so the
    # lane-dense (OUT, TB) output block satisfies the (8, 128) tiling rule.
    if B <= block_b:
        TB = B
        Bp = B
    else:
        TB = max(128, (block_b // 128) * 128)
        Bp = ((B + TB - 1) // TB) * TB

    # Cast MXU operands once here.  (In production, cast/store the weights in
    # compute_dtype at parameter-init time instead of per call.)
    xd = x.astype(compute_dtype)
    w1d = w1.astype(compute_dtype)
    w2d = w2.astype(compute_dtype)
    if Bp != B:
        xd = jnp.pad(xd, ((0, Bp - B), (0, 0)))   # zero rows -> zero scores

    out_t = pl.pallas_call(
        _mlp_kernel,
        out_shape=jax.ShapeDtypeStruct((OUT, Bp), jnp.float32),
        grid=(Bp // TB,),
        in_specs=[
            pl.BlockSpec((TB, IN), lambda i: (i, 0)),    # x tile streams over batch
            pl.BlockSpec((H, IN), lambda i: (0, 0)),     # W1 resident (DMA'd once)
            pl.BlockSpec((OUT, H), lambda i: (0, 0)),    # W2 resident (DMA'd once)
        ],
        out_specs=pl.BlockSpec((OUT, TB), lambda i: (0, i)),  # lane-dense output
        compiler_params=pltpu.CompilerParams(
            dimension_semantics=("parallel",),           # shard batch across TCs (v7x)
            vmem_limit_bytes=32 * 1024 * 1024,
        ),
    )(xd, w1d, w2d)

    scores = out_t.T                                     # (Bp, OUT)
    if Bp != B:
        scores = scores[:B]
    return scores


def _reference(x, w1, w2):
    y = x @ w1.T
    y_hat = _SELU_SCALE * jnp.where(y > 0, y, _SELU_ALPHA * jnp.expm1(y))
    return y_hat @ w2.T


if __name__ == "__main__":
    # Small shapes consistent with the module's forward.
    B, INPUT, HIDDEN, OUTPUT = 256, 16, 32, 5

    key = jax.random.PRNGKey(0)
    kx, k1, k2 = jax.random.split(key, 3)

    x = jax.random.normal(kx, (B, INPUT), dtype=jnp.float32)

    # Deterministic init mirroring nn.Linear default: U(-1/sqrt(fan_in), 1/sqrt(fan_in))
    bound1 = 1.0 / (INPUT ** 0.5)
    bound2 = 1.0 / (HIDDEN ** 0.5)
    w1 = jax.random.uniform(k1, (HIDDEN, INPUT), minval=-bound1, maxval=bound1,
                            dtype=jnp.float32)
    w2 = jax.random.uniform(k2, (OUTPUT, HIDDEN), minval=-bound2, maxval=bound2,
                            dtype=jnp.float32)

    ref = _reference(x, w1, w2)

    # f32-operand path, tiled grid (2 batch tiles of 128 rows).
    scores_f32 = one_layer_nn_forward(x, w1, w2,
                                      compute_dtype=jnp.float32, block_b=128)
    scores_f32 = jax.block_until_ready(scores_f32)
    assert scores_f32.shape == (B, OUTPUT)
    assert jnp.allclose(scores_f32, ref, atol=2e-3, rtol=2e-3), "f32 path mismatch"

    # Default bf16-MXU path (single batch block since B <= 512).
    scores_bf16 = one_layer_nn_forward(x, w1, w2)
    scores_bf16 = jax.block_until_ready(scores_bf16)
    assert scores_bf16.shape == (B, OUTPUT)
    assert jnp.allclose(scores_bf16, ref, atol=3e-2, rtol=3e-2), "bf16 path mismatch"

    print("KERNEL_OK")
</pallas_src>

<mosaic_0001>
module attributes {stable_mosaic.version = 11 : i64} {
  func.func @_mlp_kernel(%arg0: i32, %arg1: memref<128x16xf32, #tpu.memory_space<vmem>>, %arg2: memref<32x16xf32, #tpu.memory_space<vmem>>, %arg3: memref<5x32xf32, #tpu.memory_space<vmem>>, %arg4: memref<5x128xf32, #tpu.memory_space<vmem>>) attributes {dimension_semantics = [#tpu.dimension_semantics<parallel>], iteration_bounds = array<i64: 2>, scalar_prefetch = 0 : i64, scratch_operands = 0 : i64, tpu.core_type = #tpu.core_type<tc>, window_params = [{transform_indices = @transform_0, window_bounds = array<i64: 128, 16>}, {pipeline_mode = #tpu.pipeline_mode<synchronous>, transform_indices = @transform_1, window_bounds = array<i64: 32, 16>}, {pipeline_mode = #tpu.pipeline_mode<synchronous>, transform_indices = @transform_2, window_bounds = array<i64: 5, 32>}, {transform_indices = @transform_3, window_bounds = array<i64: 5, 128>}]} {
    %c0 = arith.constant 0 : index
    %c0_0 = arith.constant 0 : index
    %0 = vector.load %arg1[%c0, %c0_0] : memref<128x16xf32, #tpu.memory_space<vmem>>, vector<128x16xf32>
    %c0_1 = arith.constant 0 : index
    %c0_2 = arith.constant 0 : index
    %1 = vector.load %arg2[%c0_1, %c0_2] : memref<32x16xf32, #tpu.memory_space<vmem>>, vector<32x16xf32>
    %c0_3 = arith.constant 0 : index
    %c0_4 = arith.constant 0 : index
    %2 = vector.load %arg3[%c0_3, %c0_4] : memref<5x32xf32, #tpu.memory_space<vmem>>, vector<5x32xf32>
    %cst = arith.constant dense<0.000000e+00> : vector<32x128xf32>
    %3 = tpu.matmul %1, %0, %cst {dimension_numbers = #tpu.dot_dimension_numbers<[1], [1], [0], [0], [0, 0, 1, 0], [], []>} : vector<32x16xf32>, vector<128x16xf32>, vector<32x128xf32> -> vector<32x128xf32>
    %4 = math.absf %3 : vector<32x128xf32>
    %cst_5 = arith.constant 9.99999974E-5 : f32
    %5 = vector.broadcast %cst_5 : f32 to vector<32x128xf32>
    %6 = arith.cmpf olt, %4, %5 : vector<32x128xf32>
    %cst_6 = arith.constant 5.000000e-01 : f32
    %7 = vector.broadcast %cst_6 : f32 to vector<32x128xf32>
    %8 = arith.mulf %7, %3 : vector<32x128xf32>
    %9 = arith.mulf %8, %3 : vector<32x128xf32>
    %10 = arith.addf %3, %9 : vector<32x128xf32>
    %11 = math.exp %3 : vector<32x128xf32>
    %cst_7 = arith.constant 1.000000e+00 : f32
    %12 = vector.broadcast %cst_7 : f32 to vector<32x128xf32>
    %13 = arith.subf %11, %12 : vector<32x128xf32>
    %14 = arith.select %6, %10, %13 : vector<32x128xi1>, vector<32x128xf32>
    %cst_8 = arith.constant 1.67326319 : f32
    %15 = vector.broadcast %cst_8 : f32 to vector<32x128xf32>
    %16 = arith.mulf %15, %14 : vector<32x128xf32>
    %cst_9 = arith.constant 0.000000e+00 : f32
    %17 = vector.broadcast %cst_9 : f32 to vector<32x128xf32>
    %18 = arith.cmpf ogt, %3, %17 : vector<32x128xf32>
    %19 = arith.select %18, %3, %16 : vector<32x128xi1>, vector<32x128xf32>
    %cst_10 = arith.constant 1.05070102 : f32
    %20 = vector.broadcast %cst_10 : f32 to vector<32x128xf32>
    %21 = arith.mulf %20, %19 : vector<32x128xf32>
    %cst_11 = arith.constant dense<0.000000e+00> : vector<5x128xf32>
    %22 = tpu.matmul %2, %21, %cst_11 {dimension_numbers = #tpu.dot_dimension_numbers<[1], [0], [0], [1], [0, 0, 1, 1], [], []>} : vector<5x32xf32>, vector<32x128xf32>, vector<5x128xf32> -> vector<5x128xf32>
    %c0_12 = arith.constant 0 : index
    %c0_13 = arith.constant 0 : index
    %23 = vector.load %arg4[%c0_12, %c0_13] : memref<5x128xf32, #tpu.memory_space<vmem>>, vector<5x128xf32>
    tpu.vector_store %arg4[%c0_12, %c0_13], %22 {strides = array<i32>} : memref<5x128xf32, #tpu.memory_space<vmem>>, vector<5x128xf32>,
    return
  }
  func.func @transform_0(%arg0: i32) -> (i32, i32) {
    %c0_i32 = arith.constant 0 : i32
    %c0_i32_0 = arith.constant 0 : i32
    return %arg0, %c0_i32 : i32, i32
  }
  func.func @transform_1(%arg0: i32) -> (i32, i32) {
    %c0_i32 = arith.constant 0 : i32
    %c0_i32_0 = arith.constant 0 : i32
    %c0_i32_1 = arith.constant 0 : i32
    return %c0_i32, %c0_i32_0 : i32, i32
  }
  func.func @transform_2(%arg0: i32) -> (i32, i32) {
    %c0_i32 = arith.constant 0 : i32
    %c0_i32_0 = arith.constant 0 : i32
    %c0_i32_1 = arith.constant 0 : i32
    return %c0_i32, %c0_i32_0 : i32, i32
  }
  func.func @transform_3(%arg0: i32) -> (i32, i32) {
    %c0_i32 = arith.constant 0 : i32
    %c0_i32_0 = arith.constant 0 : i32
    return %c0_i32, %arg0 : i32, i32
  }
}

</mosaic_0001>

<llo_original>
// kernel: tpu_custom_call.1
$region0: #{tpu_custom_call.1}
  #allocation0 [shape = 'u32[]', space=smem, size = 0x4, offset = 0x4, fixed_abs, tag = 'smem constant byte address 0x4 - core index']
  #allocation1 [shape = 'u32[144,128]{1,0:T(1,128)}', space=vmem, size = 0x12000, scoped, tag = 'internal scratch']
  %s0 = inlined_call_operand.vmem [shape: f32[256,16], index: 0, kind: input, shape index: {}]
  %s1 = inlined_call_operand.vmem [shape: f32[32,16], index: 1, kind: input, shape index: {}]
  %s2 = inlined_call_operand.vmem [shape: f32[5,32], index: 2, kind: input, shape index: {}]
  %s3 = inlined_call_operand.hbm [shape: f32[5,256], index: 3, kind: output, shape index: {}]
  %s4 = sld [smem:[#allocation0]]
  $region45: #{tpu_custom_call.1} parent=0
    _
  %s6 = ssub.s32 1, %s4
  %s7 = scalar_select 0, %s6, %s4
  $region1: #{tpu_custom_call.1} parent=0
    #allocation2 [shape = 'u8[8192]{0}', space=vmem, size = 0x2000, scoped, tag = 'output window, operand 0']
    #allocation3 [shape = 's32[2]{0}', space=sflag, size = 0x8, scoped, tag = 'scoped memory for tpu_custom_call.1']
    %8 = vsyncpa [#allocation3], 0
    %s9 = scalar_lea.sflag [#allocation3], 1
    %10 = vsyncpa %s9, 0
    loop: start=0, step=1, limit=4
    $region2: #{tpu_custom_call.1} parent=1 // loop_pre_header
      _
    $region3: #{tpu_custom_call.1} parent=1 // loop_header
      %s12 = sphi 0, %s16
      %p13 = scmp.ge.s32.totalorder %s12, 4
      %s22 = sphi 0, %s24
      %s25 = sphi 0, %s22
      %s26 = sphi 0, %s25
      %s42 = sphi 0, %s26
      %s46 = sphi 0, %s46
      %s48 = sphi 0, %s46
      %s49 = sphi 0, %s48
      %s63 = sphi 0, %s49
      %s67 = sphi 0, %s67
      %s69 = sphi 0, %s67
      %s70 = sphi 0, %s69
      %s84 = sphi 0, %s70
      %s90 = sphi 0, %s92
      %s93 = sphi 0, %s90
      %s94 = sphi 0, %s93
      %s110 = sphi 0, %s94
    $region4: #{tpu_custom_call.1} parent=1 // loop_header_branch
      %15 = sbr.rel (%p13) target = $region8
    $region5: #{tpu_custom_call.1} parent=1 // loop_body
      %s17 = ssub.s32 %s12, 1
      %s18 = ssub.s32 %s12, 2
      %s19 = sadd.s32 %s12, 1
      %s20 = ssub.s32 %s12, %s19
      %p21 = scmp.eq.s32.totalorder %s20, 0
      %s23 = sadd.s32 %s22, 1
      %s24 = scalar_select %p21, %s22, %s23
      %p27 = pneg %p21
      %p28 = scmp.eq.s32.totalorder %s12, 1
      %p29 = por %p27, %p28
      %p30 = scmp.ne.s32.totalorder %s22, %s25
      %p31 = scmp.eq.s32.totalorder %s12, 0
      %p32 = por %p30, %p31
      %p33 = scmp.ne.s32.totalorder %s22, %s25
      %p34 = scmp.eq.s32.totalorder %s17, 1
      %p35 = por %p33, %p34
      %p36 = scmp.ne.s32.totalorder %s25, %s26
      %p37 = scmp.eq.s32.totalorder %s17, 0
      %p38 = por %p36, %p37
      %p39 = scmp.ne.s32.totalorder %s25, %s26
      %p40 = scmp.eq.s32.totalorder %s18, 1
      %p41 = por %p39, %p40
      %p43 = scmp.ne.s32.totalorder %s26, %s42
      %p44 = scmp.eq.s32.totalorder %s18, 0
      %p45 = por %p43, %p44
      %s47 = sadd.s32 %s46, 1
      %p50 = scmp.eq.s32.totalorder %s12, 1
      %p51 = scmp.ne.s32.totalorder %s46, %s48
      %p52 = scmp.eq.s32.totalorder %s12, 0
      %p53 = por %p51, %p52
      %p54 = scmp.ne.s32.totalorder %s46, %s48
      %p55 = scmp.eq.s32.totalorder %s17, 1
      %p56 = por %p54, %p55
      %p57 = scmp.ne.s32.totalorder %s48, %s49
      %p58 = scmp.eq.s32.totalorder %s17, 0
      %p59 = por %p57, %p58
      %p60 = scmp.ne.s32.totalorder %s48, %s49
      %p61 = scmp.eq.s32.totalorder %s18, 1
      %p62 = por %p60, %p61
      %p64 = scmp.ne.s32.totalorder %s49, %s63
      %p65 = scmp.eq.s32.totalorder %s18, 0
      %p66 = por %p64, %p65
      %s68 = sadd.s32 %s67, 1
      %p71 = scmp.eq.s32.totalorder %s12, 1
      %p72 = scmp.ne.s32.totalorder %s67, %s69
      %p73 = scmp.eq.s32.totalorder %s12, 0
      %p74 = por %p72, %p73
      %p75 = scmp.ne.s32.totalorder %s67, %s69
      %p76 = scmp.eq.s32.totalorder %s17, 1
      %p77 = por %p75, %p76
      %p78 = scmp.ne.s32.totalorder %s69, %s70
      %p79 = scmp.eq.s32.totalorder %s17, 0
      %p80 = por %p78, %p79
      %p81 = scmp.ne.s32.totalorder %s69, %s70
      %p82 = scmp.eq.s32.totalorder %s18, 1
      %p83 = por %p81, %p82
      %p85 = scmp.ne.s32.totalorder %s70, %s84
      %p86 = scmp.eq.s32.totalorder %s18, 0
      %p87 = por %p85, %p86
      %s88 = ssub.s32 %s12, %s19
      %p89 = scmp.eq.s32.totalorder %s88, 0
      %s91 = sadd.s32 %s90, 1
      %s92 = scalar_select %p89, %s90, %s91
      %p95 = pneg %p89
      %p96 = scmp.eq.s32.totalorder %s12, 1
      %p97 = por %p95, %p96
      %p98 = scmp.ne.s32.totalorder %s90, %s93
      %p99 = scmp.eq.s32.totalorder %s12, 0
      %p100 = por %p98, %p99
      %p101 = scmp.ne.s32.totalorder %s90, %s93
      %p102 = scmp.eq.s32.totalorder %s17, 1
      %p103 = por %p101, %p102
      %p104 = scmp.ne.s32.totalorder %s93, %s94
      %p105 = scmp.eq.s32.totalorder %s17, 0
      %p106 = por %p104, %p105
      %p107 = scmp.ne.s32.totalorder %s93, %s94
      %p108 = scmp.eq.s32.totalorder %s18, 1
      %p109 = por %p107, %p108
      %p111 = scmp.ne.s32.totalorder %s94, %s110
      %p112 = scmp.eq.s32.totalorder %s18, 0
      %p113 = por %p111, %p112
      %p114 = scmp.le.s32.totalorder 1, %s12
      %p115 = scmp.lt.s32.totalorder %s12, 3
      %p116 = pnand %p114, %p115
      %p117 = pneg %p116
      // Predicated region
      $region9: #{tpu_custom_call.1} parent=5 // pred_check
        _
      $region10: #{tpu_custom_call.1} parent=5 // pred_check_branch
        %119 = sbr.rel (%p116) target = $region12
      $region11: #{tpu_custom_call.1} parent=5 // pred_region
        %s120 = ssub.s32 %s12, 1
        // Predicated region
        $region13: #{tpu_custom_call.1} parent=11 // pred_check
          %p121 = pneg %p59
        $region14: #{tpu_custom_call.1} parent=11 // pred_check_branch
          %123 = sbr.rel (%p121) target = $region16
        $region15: #{tpu_custom_call.1} parent=11 // pred_region
          _
        $region16: #{tpu_custom_call.1} parent=11 // pred_fallthru
          _
        // Predicated region
        $region17: #{tpu_custom_call.1} parent=11 // pred_check
          %p124 = pneg %p80
        $region18: #{tpu_custom_call.1} parent=11 // pred_check_branch
          %126 = sbr.rel (%p124) target = $region20
        $region19: #{tpu_custom_call.1} parent=11 // pred_region
          _
        $region20: #{tpu_custom_call.1} parent=11 // pred_fallthru
          _
      $region12: #{tpu_custom_call.1} parent=5 // pred_fallthru
        _
      %p127 = scmp.lt.s32.totalorder %s12, 2
      // Predicated region
      $region21: #{tpu_custom_call.1} parent=5 // pred_check
        %p128 = pneg %p127
      $region22: #{tpu_custom_call.1} parent=5 // pred_check_branch
        %130 = sbr.rel (%p128) target = $region24
      $region23: #{tpu_custom_call.1} parent=5 // pred_region
        // Predicated region
        $region25: #{tpu_custom_call.1} parent=23 // pred_check
          %p131 = pneg %p32
        $region26: #{tpu_custom_call.1} parent=23 // pred_check_branch
          %133 = sbr.rel (%p131) target = $region28
        $region27: #{tpu_custom_call.1} parent=23 // pred_region
          %s134 = smul.u32 16, %s12
          %p135 = scmp.lt.s32.totalorder %s134, 31
          %s136 = scalar_select %p135, %s134, 31
          %s137 = smul.addr %s136, 8
          %s138 = scalar_lea.vmem %s0, %s137
          %s139 = smul.u32 16, %s12
        $region28: #{tpu_custom_call.1} parent=23 // pred_fallthru
          _
      $region24: #{tpu_custom_call.1} parent=5 // pred_fallthru
        _
      %p140 = scmp.le.s32.totalorder 1, %s12
      %p141 = scmp.lt.s32.totalorder %s12, 3
      %p142 = pnand %p140, %p141
      %p143 = pneg %p142
      // Predicated region
      $region29: #{tpu_custom_call.1} parent=5 // pred_check
        _
      $region30: #{tpu_custom_call.1} parent=5 // pred_check_branch
        %145 = sbr.rel (%p142) target = $region32
      $region31: #{tpu_custom_call.1} parent=5 // pred_region
        %s146 = ssub.s32 %s12, 1
        %s147 = smul.u32 16, %s17
        %p148 = scmp.lt.s32.totalorder %s147, 31
        %s149 = scalar_select %p148, %s147, 31
        %s150 = smul.addr %s149, 8
        %s151 = scalar_lea.vmem %s0, %s150
        %p152 = pneg %p38
        %p153 = pneg %p35
        %p154 = pneg %p59
        %p155 = pneg %p56
        %p156 = pneg %p80
        %p157 = pneg %p77
        %p158 = pneg %p106
        %p159 = pneg %p103
        %s160 = sand.u32 %s93, 1
        %s161 = scalar_lea.sflag [#allocation3], %s160
        %s162 = sand.u32 %s93, 1
        %s163 = smul.addr %s162, 8
        %s164 = scalar_lea.vmem [#allocation2], %s163
        %s165 = smul.u32 16, %s17
        %p166 = scmp.lt.s32.totalorder %s165, 31
        %s167 = scalar_select %p166, %s165, 31
        %s168 = smul.addr %s167, 8
        %s169 = scalar_lea.vmem %s0, %s168
        %s170 = smul.u32 16, %s17
        %v171 = vld [vmem:[%s169] sm:$0xff]
        %v172 = vld [vmem:[%s169 + $0x8] sm:$0xff]
        %v173 = vld [vmem:[%s169 + $0x10] sm:$0xff]
        %v174 = vld [vmem:[%s169 + $0x18] sm:$0xff]
        %v175 = vld [vmem:[%s169 + $0x20] sm:$0xff]
        %v176 = vld [vmem:[%s169 + $0x28] sm:$0xff]
        %v177 = vld [vmem:[%s169 + $0x30] sm:$0xff]
        %v178 = vld [vmem:[%s169 + $0x38] sm:$0xff]
        %v179 = vld [vmem:[%s169 + $0x40] sm:$0xff]
        %v180 = vld [vmem:[%s169 + $0x48] sm:$0xff]
        %v181 = vld [vmem:[%s169 + $0x50] sm:$0xff]
        %v182 = vld [vmem:[%s169 + $0x58] sm:$0xff]
        %v183 = vld [vmem:[%s169 + $0x60] sm:$0xff]
        %v184 = vld [vmem:[%s169 + $0x68] sm:$0xff]
        %v185 = vld [vmem:[%s169 + $0x70] sm:$0xff]
        %v186 = vld [vmem:[%s169 + $0x78] sm:$0xff]
        %v187 = vld [vmem:[%s1] sm:$0xff]
        %v188 = vld [vmem:[%s1 + $0x8] sm:$0xff]
        %v189 = vld [vmem:[%s1 + $0x10] sm:$0xff]
        %v190 = vld [vmem:[%s1 + $0x18] sm:$0xff]
        %v191 = vld [vmem:[%s2] sm:$0x1f]
        %vm192 = vcmask 130048
        %v194 = vsel %vm192, %v187, 0
        %v197 = vsel %vm192, %v188, 0
        %v200 = vsel %vm192, %v189, 0
        %v203 = vsel %vm192, %v190, 0
        %v206 = vsel %vm192, %v171, 0
        %v209 = vsel %vm192, %v172, 0
        %v212 = vsel %vm192, %v173, 0
        %v215 = vsel %vm192, %v174, 0
        %v218 = vsel %vm192, %v175, 0
        %v221 = vsel %vm192, %v176, 0
        %v224 = vsel %vm192, %v177, 0
        %v227 = vsel %vm192, %v178, 0
        %v230 = vsel %vm192, %v179, 0
        %v233 = vsel %vm192, %v180, 0
        %v236 = vsel %vm192, %v181, 0
        %v239 = vsel %vm192, %v182, 0
        %v242 = vsel %vm192, %v183, 0
        %v245 = vsel %vm192, %v184, 0
        %v248 = vsel %vm192, %v185, 0
        %v251 = vsel %vm192, %v186, 0
        %253 = vmatprep.subr.mxu0 0.0
        %254 = vmatpush1.xpose.msra.mxu0 %v206
        %255 = vmatprep.subr.mxu0 0.0
        %256 = vmatpush1.xpose.msra.mxu0 %v209
        %257 = vmatprep.subr.mxu0 0.0
        %258 = vmatpush1.xpose.msra.mxu0 %v212
        %259 = vmatprep.subr.mxu0 0.0
        %260 = vmatpush1.xpose.msra.mxu0 %v215
        %261 = vmatprep.subr.mxu0 0.0
        %262 = vmatpush1.xpose.msra.mxu0 %v218
        %263 = vmatprep.subr.mxu0 0.0
        %264 = vmatpush1.xpose.msra.mxu0 %v221
        %265 = vmatprep.subr.mxu0 0.0
        %266 = vmatpush1.xpose.msra.mxu0 %v224
        %267 = vmatprep.subr.mxu0 0.0
        %268 = vmatpush1.xpose.msra.mxu0 %v227
        %269 = vmatprep.subr.mxu0 0.0
        %270 = vmatpush1.xpose.msra.mxu0 %v230
        %271 = vmatprep.subr.mxu0 0.0
        %272 = vmatpush1.xpose.msra.mxu0 %v233
        %273 = vmatprep.subr.mxu0 0.0
        %274 = vmatpush1.xpose.msra.mxu0 %v236
        %275 = vmatprep.subr.mxu0 0.0
        %276 = vmatpush1.xpose.msra.mxu0 %v239
        %277 = vmatprep.subr.mxu0 0.0
        %278 = vmatpush1.xpose.msra.mxu0 %v242
        %279 = vmatprep.subr.mxu0 0.0
        %280 = vmatpush1.xpose.msra.mxu0 %v245
        %281 = vmatprep.subr.mxu0 0.0
        %282 = vmatpush1.xpose.msra.mxu0 %v248
        %283 = vmatprep.subr.mxu0 0.0
        %284 = vmatpush1.xpose.msra.mxu0 %v251
        %285 = vmatprep.subr.mxu0 0.0
        %286 = vmatpush1.xpose.msra.mxu0 0.0
        %287 = vmatprep.subr.mxu0 0.0
        %288 = vmatpush1.xpose.msra.mxu0 0.0
        %289 = vmatprep.subr.mxu0 0.0
        %290 = vmatpush1.xpose.msra.mxu0 0.0
        %291 = vmatprep.subr.mxu0 0.0
        %292 = vmatpush1.xpose.msra.mxu0 0.0
        %293 = vmatprep.subr.mxu0 0.0
        %294 = vmatpush1.xpose.msra.mxu0 0.0
        %295 = vmatprep.subr.mxu0 0.0
        %296 = vmatpush1.xpose.msra.mxu0 0.0
        %297 = vmatprep.subr.mxu0 0.0
        %298 = vmatpush1.xpose.msra.mxu0 0.0
        %299 = vmatprep.subr.mxu0 0.0
        %300 = vmatpush1.xpose.msra.mxu0 0.0
        %301 = vmatprep.subr.mxu0 0.0
        %302 = vmatpush1.xpose.msra.mxu0 0.0
        %303 = vmatprep.subr.mxu0 0.0
        %304 = vmatpush1.xpose.msra.mxu0 0.0
        %305 = vmatprep.subr.mxu0 0.0
        %306 = vmatpush1.xpose.msra.mxu0 0.0
        %307 = vmatprep.subr.mxu0 0.0
        %308 = vmatpush1.xpose.msra.mxu0 0.0
        %309 = vmatprep.subr.mxu0 0.0
        %310 = vmatpush1.xpose.msra.mxu0 0.0
        %311 = vmatprep.subr.mxu0 0.0
        %312 = vmatpush1.xpose.msra.mxu0 0.0
        %313 = vmatprep.subr.mxu0 0.0
        %314 = vmatpush1.xpose.msra.mxu0 0.0
        %315 = vmatprep.subr.mxu0 0.0
        %316 = vmatpush1.xpose.msra.mxu0 0.0
        %317 = vmatprep.mubr.f32.mxu0 0.0
        %318 = vmatmul.mubr.f32.gmra.mrb[0].mxu0 %v194
        %v319 = vpop.f32.mrb[0].mxu0
        %v320 = vadd.f32 0.0, %v319
        %v321 = vpop.f32.mrb[0].mxu0
        %322 = vmatprep.mubr.f32.mxu0 0.0
        %323 = vmatmul.mubr.f32.gmra.mrb[0].mxu0 %v197
        %v324 = vpop.f32.mrb[0].mxu0
        %v325 = vadd.f32 0.0, %v324
        %v326 = vpop.f32.mrb[0].mxu0
        %327 = vmatprep.mubr.f32.mxu0 0.0
        %328 = vmatmul.mubr.f32.gmra.mrb[0].mxu0 %v200
        %v329 = vpop.f32.mrb[0].mxu0
        %v330 = vadd.f32 0.0, %v329
        %v331 = vpop.f32.mrb[0].mxu0
        %332 = vmatprep.mubr.f32.mxu0 0.0
        %333 = vmatmul.mubr.f32.gmra.mrb[0].mxu0 %v203
        %v334 = vpop.f32.mrb[0].mxu0
        %v335 = vadd.f32 0.0, %v334
        %v336 = vpop.f32.mrb[0].mxu0
        %337 = vdwg.mxu0
        %v338 = vand.u32 2147483647, %v320
        %v339 = vand.u32 2147483647, %v325
        %v340 = vand.u32 2147483647, %v330
        %v341 = vand.u32 2147483647, %v335
        %vm342 = vcmp.lt.f32.partialorder %v338, 0.0001
        %vm343 = vcmp.lt.f32.partialorder %v339, 0.0001
        %vm344 = vcmp.lt.f32.partialorder %v340, 0.0001
        %vm345 = vcmp.lt.f32.partialorder %v341, 0.0001
        %v346 = vmul.f32 %v320, 0.5
        %v347 = vmul.f32 %v325, 0.5
        %v348 = vmul.f32 %v330, 0.5
        %v349 = vmul.f32 %v335, 0.5
        %v350 = vmul.f32 %v346, %v320
        %v351 = vmul.f32 %v347, %v325
        %v352 = vmul.f32 %v348, %v330
        %v353 = vmul.f32 %v349, %v335
        %v354 = vadd.f32 %v320, %v350
        %v355 = vadd.f32 %v325, %v351
        %v356 = vadd.f32 %v330, %v352
        %v357 = vadd.f32 %v335, %v353
        %v358 = vmul.f32 %v320, 1.442695
        %v359 = vpow.pop %v358
        %v360 = vmul.f32 %v325, 1.442695
        %v361 = vpow.pop %v360
        %v362 = vmul.f32 %v330, 1.442695
        %v363 = vpow.pop %v362
        %v364 = vmul.f32 %v335, 1.442695
        %v365 = vpow.pop %v364
        %v366 = vsub.f32 %v359, 1.0
        %v367 = vsub.f32 %v361, 1.0
        %v368 = vsub.f32 %v363, 1.0
        %v369 = vsub.f32 %v365, 1.0
        %v370 = vsel %vm342, %v354, %v366
        %v371 = vsel %vm343, %v355, %v367
        %v372 = vsel %vm344, %v356, %v368
        %v373 = vsel %vm345, %v357, %v369
        %v374 = vmul.f32 %v370, 1.6732632
        %v375 = vmul.f32 %v371, 1.6732632
        %v376 = vmul.f32 %v372, 1.6732632
        %v377 = vmul.f32 %v373, 1.6732632
        %vm378 = vcmp.gt.f32.partialorder %v320, 0.0
        %vm379 = vcmp.gt.f32.partialorder %v325, 0.0
        %vm380 = vcmp.gt.f32.partialorder %v330, 0.0
        %vm381 = vcmp.gt.f32.partialorder %v335, 0.0
        %v382 = vsel %vm378, %v320, %v374
        %v383 = vsel %vm379, %v325, %v375
        %v384 = vsel %vm380, %v330, %v376
        %v385 = vsel %vm381, %v335, %v377
        %v386 = vmul.f32 %v382, 1.050701
        %v387 = vmul.f32 %v383, 1.050701
        %v388 = vmul.f32 %v384, 1.050701
        %v389 = vmul.f32 %v385, 1.050701
        %vm390 = vcmask 261120
        %v392 = vsel %vm390, %v191, 0
        %394 = vmatprep.subr.mxu0 0.0
        %395 = vmatpush1.msra.mxu0 %v386
        %396 = vmatprep.subr.mxu0 0.0
        %397 = vmatpush1.msra.mxu0 %v387
        %398 = vmatprep.subr.mxu0 0.0
        %399 = vmatpush1.msra.mxu0 %v388
        %400 = vmatprep.subr.mxu0 0.0
        %401 = vmatpush1.msra.mxu0 %v389
        %402 = vmatprep.subr.mxu0 0.0
        %403 = vmatpush1.msra.mxu0 0.0
        %404 = vmatprep.subr.mxu0 0.0
        %405 = vmatpush1.msra.mxu0 0.0
        %406 = vmatprep.subr.mxu0 0.0
        %407 = vmatpush1.msra.mxu0 0.0
        %408 = vmatprep.subr.mxu0 0.0
        %409 = vmatpush1.msra.mxu0 0.0
        %410 = vmatprep.subr.mxu0 0.0
        %411 = vmatpush1.msra.mxu0 0.0
        %412 = vmatprep.subr.mxu0 0.0
        %413 = vmatpush1.msra.mxu0 0.0
        %414 = vmatprep.subr.mxu0 0.0
        %415 = vmatpush1.msra.mxu0 0.0
        %416 = vmatprep.subr.mxu0 0.0
        %417 = vmatpush1.msra.mxu0 0.0
        %418 = vmatprep.subr.mxu0 0.0
        %419 = vmatpush1.msra.mxu0 0.0
        %420 = vmatprep.subr.mxu0 0.0
        %421 = vmatpush1.msra.mxu0 0.0
        %422 = vmatprep.subr.mxu0 0.0
        %423 = vmatpush1.msra.mxu0 0.0
        %424 = vmatprep.subr.mxu0 0.0
        %425 = vmatpush1.msra.mxu0 0.0
        %426 = vmatprep.subr.mxu0 0.0
        %427 = vmatpush1.msra.mxu0 0.0
        %428 = vmatprep.subr.mxu0 0.0
        %429 = vmatpush1.msra.mxu0 0.0
        %430 = vmatprep.subr.mxu0 0.0
        %431 = vmatpush1.msra.mxu0 0.0
        %432 = vmatprep.subr.mxu0 0.0
        %433 = vmatpush1.msra.mxu0 0.0
        %434 = vmatprep.subr.mxu0 0.0
        %435 = vmatpush1.msra.mxu0 0.0
        %436 = vmatprep.subr.mxu0 0.0
        %437 = vmatpush1.msra.mxu0 0.0
        %438 = vmatprep.subr.mxu0 0.0
        %439 = vmatpush1.msra.mxu0 0.0
        %440 = vmatprep.subr.mxu0 0.0
        %441 = vmatpush1.msra.mxu0 0.0
        %442 = vmatprep.subr.mxu0 0.0
        %443 = vmatpush1.msra.mxu0 0.0
        %444 = vmatprep.subr.mxu0 0.0
        %445 = vmatpush1.msra.mxu0 0.0
        %446 = vmatprep.subr.mxu0 0.0
        %447 = vmatpush1.msra.mxu0 0.0
        %448 = vmatprep.subr.mxu0 0.0
        %449 = vmatpush1.msra.mxu0 0.0
        %450 = vmatprep.subr.mxu0 0.0
        %451 = vmatpush1.msra.mxu0 0.0
        %452 = vmatprep.subr.mxu0 0.0
        %453 = vmatpush1.msra.mxu0 0.0
        %454 = vmatprep.subr.mxu0 0.0
        %455 = vmatpush1.msra.mxu0 0.0
        %456 = vmatprep.subr.mxu0 0.0
        %457 = vmatpush1.msra.mxu0 0.0
        %458 = vmatprep.mubr.f32.mxu0 0.0
        %459 = vmatmul.mubr.f32.gmra.mrb[0].mxu0 %v392
        %v460 = vpop.f32.mrb[0].mxu0
        %v461 = vadd.f32 0.0, %v460
        %v462 = vpop.f32.mrb[0].mxu0
        %463 = vdwg.mxu0
        %464 = vst [vmem:[%s164] sm:$0x1f] %v461
        %s465 = sand.u32 %s93, 1
        %s466 = scalar_lea.sflag [#allocation3], %s465
        %s467 = sand.u32 %s93, 1
        %s468 = smul.addr %s467, 8
        %s469 = scalar_lea.vmem [#allocation2], %s468
        // Predicated region
        $region33: #{tpu_custom_call.1} parent=31 // pred_check
          %p470 = pneg %p103
        $region34: #{tpu_custom_call.1} parent=31 // pred_check_branch
          %472 = sbr.rel (%p470) target = $region36
        $region35: #{tpu_custom_call.1} parent=31 // pred_region
          %s474 = ssub.s32 128, 128
          %475 = vsyncadd %s466, %s474
          %s476 = smul.addr %s17, 128
          %s477 = scalar_lea.hbm %s3, %s476
          %s479 = sshll.u32 %s469, 4
          %s480 = int_to_ptr.vmem [resolvable:$true] %s479
          %482 = dma.vmem_to_hbm [thread:$0]  %s480, 128, %s477, %s466
        $region36: #{tpu_custom_call.1} parent=31 // pred_fallthru
          _
      $region32: #{tpu_custom_call.1} parent=5 // pred_fallthru
        _
      %p483 = scmp.le.s32.totalorder 2, %s12
      // Predicated region
      $region37: #{tpu_custom_call.1} parent=5 // pred_check
        %p484 = pneg %p483
      $region38: #{tpu_custom_call.1} parent=5 // pred_check_branch
        %486 = sbr.rel (%p484) target = $region40
      $region39: #{tpu_custom_call.1} parent=5 // pred_region
        %s487 = ssub.s32 %s12, 2
        // Predicated region
        $region41: #{tpu_custom_call.1} parent=39 // pred_check
          %p488 = pneg %p109
        $region42: #{tpu_custom_call.1} parent=39 // pred_check_branch
          %490 = sbr.rel (%p488) target = $region44
        $region43: #{tpu_custom_call.1} parent=39 // pred_region
          %s491 = sand.u32 %s94, 1
          %s492 = scalar_lea.sflag [#allocation3], %s491
          %s493 = sand.u32 %s94, 1
          %s494 = smul.addr %s493, 8
          %s495 = scalar_lea.vmem [#allocation2], %s494
          %496 = dma.done %s492, 128
        $region44: #{tpu_custom_call.1} parent=39 // pred_fallthru
          _
      $region40: #{tpu_custom_call.1} parent=5 // pred_fallthru
        _
    $region6: #{tpu_custom_call.1} parent=1 // loop_footer
      %s16 = sadd.s32 1, %s12
    $region7: #{tpu_custom_call.1} parent=1 // loop_footer_branch
      %11 = sbr.rel target = $region3
    $region8: #{tpu_custom_call.1} parent=1 // loop_exit
      _
    %497 = vsyncpa [#allocation3], 1
    %s498 = scalar_lea.sflag [#allocation3], 1
    %499 = vsyncpa %s498, 1

</llo_original>
